<compile_context>
chip_gen: v7x
topology: tpu7x:2x2x1
jax: 0.10.0
libtpu: 0.0.40
codegen_flags: <defaults>
</compile_context>

<pallas_src>
import functools

import jax
import jax.numpy as jnp
from jax.experimental import pallas as pl
from jax.experimental.pallas import tpu as pltpu


# ----------------------------------------------------------------------------
# VMEM budgeting (portable across v5e / v6e / v7x)
# ----------------------------------------------------------------------------
def _vmem_capacity_bytes():
    try:
        cap = int(pltpu.get_tpu_info().vmem_capacity_bytes)
        if cap > 0:
            return cap
    except Exception:
        pass
    return 64 * 1024 * 1024          # conservative default = v7x per-core VMEM


_VMEM_CAP = _vmem_capacity_bytes()
# 96 MiB scoped limit on 128-MiB-VMEM chips (v5e/v6e), 64 MiB otherwise (v7x).
_VMEM_LIMIT = (min(_VMEM_CAP, 96 * 1024 * 1024)
               if _VMEM_CAP >= 120 * 1024 * 1024
               else min(_VMEM_CAP, 64 * 1024 * 1024))
_VMEM_PLAN = int(0.55 * _VMEM_LIMIT)   # planning budget for residency/tiles

_TM = 512                 # row tile of A / output
_TK = 512                 # contraction tile (k-tiled fallback); also n padding
_FUSED_MAX_NODES = 1024   # fused single-call path (activations VMEM-resident)


def _compiler_params(semantics):
    return pltpu.CompilerParams(dimension_semantics=semantics,
                                vmem_limit_bytes=_VMEM_LIMIT)


# ----------------------------------------------------------------------------
# small helpers
# ----------------------------------------------------------------------------
def _round_up(x, m):
    return ((x + m - 1) // m) * m


def _pad2(a, rows, cols):
    return jnp.pad(a, ((0, rows - a.shape[0]), (0, cols - a.shape[1])))


def _fold_bn(w, b, bn, eps):
    """Fold eval-mode BatchNorm affine into the GCN weight/bias."""
    if bn is None:
        return w.astype(jnp.float32), b.astype(jnp.float32)
    gamma, beta, mean, var = bn
    s = gamma * jax.lax.rsqrt(var + eps)
    w_eff = w * s[None, :]
    b_eff = b * s + (beta - mean * s)
    return w_eff.astype(jnp.float32), b_eff.astype(jnp.float32)


# ----------------------------------------------------------------------------
# Path 1: small graphs — all layers fused into ONE pallas_call, activations
#         stay resident in VMEM between layers.  bf16 MXU matmuls, f32 acc.
# ----------------------------------------------------------------------------
def _fused_gnn_kernel(*refs, num_layers):
    a_ref, x_ref = refs[0], refs[1]
    o_ref = refs[-1]
    wb = refs[2:-1]                       # (w0, b0, w1, b1, ...)
    a = a_ref[...]                        # bf16
    h = x_ref[...]                        # bf16
    for i in range(num_layers):
        w = wb[2 * i][...]                # bf16
        b = wb[2 * i + 1][...]            # f32
        ah = jnp.dot(a, h, preferred_element_type=jnp.float32)
        h = jnp.dot(ah.astype(jnp.bfloat16), w,
                    preferred_element_type=jnp.float32) + b
        if i < num_layers - 1:            # BN already folded into w/b
            h = jnp.maximum(h, 0.0).astype(jnp.bfloat16)
    o_ref[...] = h.astype(o_ref.dtype)


def _fused_vmem_estimate(n, layers, d0):
    n_pad = _round_up(max(n, 16), 16)
    dims_pad = [_round_up(d, 128)
                for d in [d0] + [w.shape[1] for w, _ in layers]]
    dmax = max(dims_pad)
    est = n_pad * n_pad * 2 + n_pad * dims_pad[0] * 2
    est += sum(dims_pad[i] * dims_pad[i + 1] * 2 for i in range(len(layers)))
    est += sum(dims_pad[1:]) * 4
    est += 4 * n_pad * dmax * 4           # live f32 intermediates (margin)
    return est


def _gnn_forward_fused(a_norm, x, layers):
    n = x.shape[0]
    n_pad = _round_up(max(n, 16), 16)
    dims = [x.shape[1]] + [w.shape[1] for w, _ in layers]
    dims_pad = [_round_up(d, 128) for d in dims]   # lane-dense feature dims

    args = [
        _pad2(a_norm, n_pad, n_pad).astype(jnp.bfloat16),
        _pad2(x.astype(jnp.float32), n_pad, dims_pad[0]).astype(jnp.bfloat16),
    ]
    for i, (w, b) in enumerate(layers):
        args.append(_pad2(w, dims_pad[i], dims_pad[i + 1]).astype(jnp.bfloat16))
        args.append(_pad2(b.reshape(1, -1), 1, dims_pad[i + 1]))      # f32

    out_shape = jax.ShapeDtypeStruct((n_pad, dims_pad[-1]), jnp.float32)
    kernel = functools.partial(_fused_gnn_kernel, num_layers=len(layers))
    out = pl.pallas_call(
        kernel,
        grid=(1,),
        out_shape=out_shape,
        in_specs=[pl.BlockSpec(a.shape, lambda i, _nd=a.ndim: (0,) * _nd)
                  for a in args],
        out_specs=pl.BlockSpec(out_shape.shape, lambda i: (0, 0)),
        compiler_params=_compiler_params(("arbitrary",)),
    )(*args)
    return out[:n, :layers[-1][0].shape[1]]


# ----------------------------------------------------------------------------
# Path 2: large graphs — tiled, pipelined, bf16-streamed kernels.
# ----------------------------------------------------------------------------
def _xw_kernel(x_ref, w_ref, o_ref):
    """Row-tiled feature transform  XW = X @ W  (done ONCE per layer)."""
    o_ref[...] = jnp.dot(x_ref[...], w_ref[...],
                         preferred_element_type=jnp.float32).astype(o_ref.dtype)


def _feature_transform(x_bf16, w_bf16):
    n_pad, d_in = x_bf16.shape
    d_out = w_bf16.shape[1]
    tm = min(_TM, n_pad)
    return pl.pallas_call(
        _xw_kernel,
        out_shape=jax.ShapeDtypeStruct((n_pad, d_out), jnp.bfloat16),
        grid_spec=pltpu.PrefetchScalarGridSpec(
            num_scalar_prefetch=0,
            grid=(n_pad // tm,),
            in_specs=[pl.BlockSpec((tm, d_in), lambda i: (i, 0)),
                      pl.BlockSpec((d_in, d_out), lambda i: (0, 0))],
            out_specs=pl.BlockSpec((tm, d_out), lambda i: (i, 0)),
        ),
        compiler_params=_compiler_params(("parallel",)),
    )(x_bf16, w_bf16)


def _agg_resident_kernel(*refs, apply_w, relu):
    """M-resident aggregation:  out = [relu]( (A_row_slab @ M) [@ W] + b )

    grid = (row_tile i,).  M has a constant block index so it is DMA'd once
    and stays in VMEM for the whole grid; no k loop, no accumulator scratch.
    """
    if apply_w:
        a_ref, m_ref, w_ref, b_ref, o_ref = refs
    else:
        a_ref, m_ref, b_ref, o_ref = refs
        w_ref = None
    h = jnp.dot(a_ref[...], m_ref[...], preferred_element_type=jnp.float32)
    if apply_w:
        h = jnp.dot(h.astype(jnp.bfloat16), w_ref[...],
                    preferred_element_type=jnp.float32)
    h = h + b_ref[...]
    if relu:
        h = jnp.maximum(h, 0.0)
    o_ref[...] = h.astype(o_ref.dtype)


def _agg_ktiled_kernel(*refs, apply_w, relu):
    """Fallback k-tiled aggregation:  out = [relu]( (A @ M) [@ W] + b )

    grid = (row_tile i, contraction_tile k).  f32 accumulator lives in VMEM
    across k; the epilogue (optional bf16 W matmul, bias, relu, store) runs
    only at the last k step.
    """
    if apply_w:
        a_ref, m_ref, w_ref, b_ref, o_ref, acc_ref = refs
    else:
        a_ref, m_ref, b_ref, o_ref, acc_ref = refs
        w_ref = None
    k = pl.program_id(1)

    @pl.when(k == 0)
    def _():
        acc_ref[...] = jnp.zeros_like(acc_ref)

    acc_ref[...] += jnp.dot(a_ref[...], m_ref[...],
                            preferred_element_type=jnp.float32)

    @pl.when(k == pl.num_programs(1) - 1)
    def _():
        h = acc_ref[...]
        if apply_w:
            h = jnp.dot(h.astype(jnp.bfloat16), w_ref[...],
                        preferred_element_type=jnp.float32)
        h = h + b_ref[...]
        if relu:
            h = jnp.maximum(h, 0.0)
        o_ref[...] = h.astype(o_ref.dtype)


def _gcn_layer_tiled(a_bf16, h_bf16, w_eff, b_eff, *, relu, out_dtype,
                     force_ktiled=False):
    """One GCN layer, choosing the cheaper matmul association:
       Din < Dout :  (A @ X) @ W      (W applied once in the epilogue)
       Din >= Dout:  A @ (X @ W)      (XW precomputed once, row-tiled)
    """
    n_pad = a_bf16.shape[0]
    d_in_p = h_bf16.shape[1]
    d_out_p = _round_up(w_eff.shape[1], 128)
    w_pad = _pad2(w_eff, d_in_p, d_out_p).astype(jnp.bfloat16)
    b_pad = _pad2(b_eff.reshape(1, -1), 1, d_out_p)            # f32

    apply_w = d_in_p < d_out_p      # aggregate over the narrower feature width
    if apply_w:
        m, f = h_bf16, d_in_p                                  # M = X (bf16)
    else:
        m, f = _feature_transform(h_bf16, w_pad), d_out_p      # M = XW (bf16)

    tm = min(_TM, n_pad)
    out_bytes = jnp.dtype(out_dtype).itemsize

    # Working set of the M-resident plan (double-buffers counted conservatively).
    resident_bytes = (2 * tm * n_pad * 2        # A row slab, bf16, 2 buffers
                      + 2 * n_pad * f * 2       # M (constant index)
                      + 2 * tm * d_out_p * out_bytes
                      + 2 * d_out_p * 4)        # bias
    if apply_w:
        resident_bytes += 2 * d_in_p * d_out_p * 2

    if (not force_ktiled) and resident_bytes <= _VMEM_PLAN:
        # --- M-resident path: M DMA'd once, reused by every row tile --------
        args = [a_bf16, m]
        in_specs = [pl.BlockSpec((tm, n_pad), lambda i: (i, 0)),
                    pl.BlockSpec((n_pad, f), lambda i: (0, 0))]
        if apply_w:
            args.append(w_pad)
            in_specs.append(pl.BlockSpec((d_in_p, d_out_p), lambda i: (0, 0)))
        args.append(b_pad)
        in_specs.append(pl.BlockSpec((1, d_out_p), lambda i: (0, 0)))
        kernel = functools.partial(_agg_resident_kernel,
                                   apply_w=apply_w, relu=relu)
        return pl.pallas_call(
            kernel,
            out_shape=jax.ShapeDtypeStruct((n_pad, d_out_p), out_dtype),
            grid_spec=pltpu.PrefetchScalarGridSpec(
                num_scalar_prefetch=0,
                grid=(n_pad // tm,),
                in_specs=in_specs,
                out_specs=pl.BlockSpec((tm, d_out_p), lambda i: (i, 0)),
            ),
            compiler_params=_compiler_params(("parallel",)),
        )(*args)

    # --- fallback: k-tiled aggregation with resident f32 accumulator --------
    tk = min(_TK, n_pad)
    args = [a_bf16, m]
    in_specs = [pl.BlockSpec((tm, tk), lambda i, k: (i, k)),
                pl.BlockSpec((tk, f), lambda i, k: (k, 0))]
    if apply_w:
        args.append(w_pad)
        in_specs.append(pl.BlockSpec((d_in_p, d_out_p), lambda i, k: (0, 0)))
    args.append(b_pad)
    in_specs.append(pl.BlockSpec((1, d_out_p), lambda i, k: (0, 0)))
    kernel = functools.partial(_agg_ktiled_kernel, apply_w=apply_w, relu=relu)
    return pl.pallas_call(
        kernel,
        out_shape=jax.ShapeDtypeStruct((n_pad, d_out_p), out_dtype),
        grid_spec=pltpu.PrefetchScalarGridSpec(
            num_scalar_prefetch=0,
            grid=(n_pad // tm, n_pad // tk),
            in_specs=in_specs,
            out_specs=pl.BlockSpec((tm, d_out_p), lambda i, k: (i, 0)),
            scratch_shapes=[pltpu.VMEM((tm, f), jnp.float32)],
        ),
        compiler_params=_compiler_params(("parallel", "arbitrary")),
    )(*args)


def _gnn_forward_tiled(a_norm, x, layers, *, force_ktiled=False):
    n = x.shape[0]
    n_pad = _round_up(n, _TK)      # always pad n to the contraction tile
    a_bf16 = _pad2(a_norm, n_pad, n_pad).astype(jnp.bfloat16)
    h = _pad2(x.astype(jnp.float32), n_pad,
              _round_up(x.shape[1], 128)).astype(jnp.bfloat16)
    for li, (w, b) in enumerate(layers):
        last = li == len(layers) - 1
        # Non-final layers write bf16 straight from the kernel and feed it to
        # the next layer (no f32 intermediate writeback / extra cast pass).
        h = _gcn_layer_tiled(a_bf16, h, w, b,
                             relu=not last,
                             out_dtype=jnp.float32 if last else jnp.bfloat16,
                             force_ktiled=force_ktiled)
    return h[:n, :layers[-1][0].shape[1]]


# ----------------------------------------------------------------------------
# Plain-JAX glue: dense symmetric-normalized adjacency  D^-1/2 (A + I) D^-1/2
# (edge_index convention: edge_index[0] = source, edge_index[1] = target;
#  duplicate edges are summed, matching PyG GCNConv.)
# ----------------------------------------------------------------------------
def build_normalized_adj(edge_index, num_nodes):
    src = edge_index[0]
    dst = edge_index[1]
    adj = jnp.zeros((num_nodes, num_nodes), jnp.float32)
    adj = adj.at[dst, src].add(1.0)                        # A[target, source]
    adj = adj + jnp.eye(num_nodes, dtype=jnp.float32)      # self loops
    deg = adj.sum(axis=1)
    deg_inv_sqrt = jnp.where(deg > 0.0, jax.lax.rsqrt(deg), 0.0)
    return deg_inv_sqrt[:, None] * adj * deg_inv_sqrt[None, :]


# ----------------------------------------------------------------------------
# Parameter init (deterministic, synthetic)
# ----------------------------------------------------------------------------
def _glorot(key, fan_in, fan_out):
    limit = (6.0 / (fan_in + fan_out)) ** 0.5
    return jax.random.uniform(key, (fan_in, fan_out), jnp.float32, -limit, limit)


def init_gnn_params(key, input_dim, hidden_dim=128, output_dim=64, num_layers=3):
    in_dims = [input_dim] + [hidden_dim] * (num_layers - 1)
    out_dims = [hidden_dim] * (num_layers - 1) + [output_dim]
    convs, bns = [], []
    for i in range(num_layers):
        key, kw = jax.random.split(key)
        w = _glorot(kw, in_dims[i], out_dims[i])
        b = jnp.zeros((out_dims[i],), jnp.float32)         # GCNConv bias init
        convs.append((w, b))
    for i in range(num_layers - 1):
        key, km, kv = jax.random.split(key, 3)
        gamma = jnp.ones((out_dims[i],), jnp.float32)      # BN defaults
        beta = jnp.zeros((out_dims[i],), jnp.float32)
        mean = 0.1 * jax.random.normal(km, (out_dims[i],), jnp.float32)
        var = 1.0 + 0.1 * jax.random.uniform(kv, (out_dims[i],), jnp.float32)
        bns.append((gamma, beta, mean, var))
    return {"convs": convs, "bns": bns}


# ----------------------------------------------------------------------------
# Full forward (Pallas) and a pure-JAX reference
# ----------------------------------------------------------------------------
def gnn_forward(params, x, edge_index, *, eps=1e-5, force_ktiled=False):
    num_nodes = x.shape[0]
    a_norm = build_normalized_adj(edge_index, num_nodes)
    num_layers = len(params["convs"])
    layers = []
    for i in range(num_layers):
        w, b = params["convs"][i]
        bn = params["bns"][i] if i < num_layers - 1 else None
        layers.append(_fold_bn(w, b, bn, eps))
    # TODO(synk): nn.Dropout(0.3) is stochastic in train mode; identity here (eval mode).
    if (not force_ktiled
            and num_nodes <= _FUSED_MAX_NODES
            and _fused_vmem_estimate(num_nodes, layers, x.shape[1]) <= _VMEM_PLAN):
        return _gnn_forward_fused(a_norm, x, layers)
    return _gnn_forward_tiled(a_norm, x, layers, force_ktiled=force_ktiled)


def gnn_reference(params, x, edge_index, *, eps=1e-5):
    """Pure-JAX f32 reference (dense, un-fused) for correctness checking."""
    a = build_normalized_adj(edge_index, x.shape[0])
    num_layers = len(params["convs"])
    h = x.astype(jnp.float32)
    for i in range(num_layers):
        w, b = params["convs"][i]
        h = a @ (h @ w) + b
        if i < num_layers - 1:
            gamma, beta, mean, var = params["bns"][i]
            h = (h - mean) * jax.lax.rsqrt(var + eps) * gamma + beta
            h = jnp.maximum(h, 0.0)
    return h


if __name__ == "__main__":
    key = jax.random.PRNGKey(0)

    def make_graph(k, num_nodes, num_edges, input_dim):
        k_x, k_src, k_off = jax.random.split(k, 3)
        x = jax.random.normal(k_x, (num_nodes, input_dim), jnp.float32)
        src = jax.random.randint(k_src, (num_edges,), 0, num_nodes, jnp.int32)
        off = jax.random.randint(k_off, (num_edges,), 1, num_nodes, jnp.int32)
        dst = (src + off) % num_nodes
        return x, jnp.stack([src, dst], axis=0)

    def check(out, ref, shape, tag):
        assert out.shape == shape, f"{tag}: shape {out.shape} != {shape}"
        assert bool(jnp.all(jnp.isfinite(out))), f"{tag}: non-finite output"
        err = float(jnp.max(jnp.abs(out - ref)))
        tol = 5e-2 * max(1.0, float(jnp.max(jnp.abs(ref))))
        assert err <= tol, f"{tag}: error {err} > {tol}"

    k1, k2, k3, k4 = jax.random.split(key, 4)

    # ---- small graph: fused single-call (VMEM-resident) path ----------------
    x_s, ei_s = make_graph(k1, 32, 64, 16)
    params_s = init_gnn_params(k2, input_dim=16, hidden_dim=32, output_dim=16,
                               num_layers=3)
    out_s = jax.block_until_ready(gnn_forward(params_s, x_s, ei_s))
    check(out_s, gnn_reference(params_s, x_s, ei_s), (32, 16), "fused")

    # ---- medium graph: tiled path (M-resident aggregation) ------------------
    x_m, ei_m = make_graph(k3, 1200, 4800, 64)
    params_m = init_gnn_params(k4, input_dim=64, hidden_dim=256, output_dim=64,
                               num_layers=3)
    ref_m = gnn_reference(params_m, x_m, ei_m)
    out_m = jax.block_until_ready(gnn_forward(params_m, x_m, ei_m))
    check(out_m, ref_m, (1200, 64), "tiled/M-resident")

    # ---- same graph through the k-tiled accumulator fallback ----------------
    out_k = jax.block_until_ready(
        gnn_forward(params_m, x_m, ei_m, force_ktiled=True))
    check(out_k, ref_m, (1200, 64), "tiled/k-fallback")

    print("KERNEL_OK")
</pallas_src>

<mosaic_0001>
module attributes {stable_mosaic.version = 11 : i64} {
  func.func @_fused_gnn_kernel(%arg0: i32, %arg1: memref<32x32xbf16, #tpu.memory_space<vmem>>, %arg2: memref<32x128xbf16, #tpu.memory_space<vmem>>, %arg3: memref<128x128xbf16, #tpu.memory_space<vmem>>, %arg4: memref<1x128xf32, #tpu.memory_space<vmem>>, %arg5: memref<128x128xbf16, #tpu.memory_space<vmem>>, %arg6: memref<1x128xf32, #tpu.memory_space<vmem>>, %arg7: memref<128x128xbf16, #tpu.memory_space<vmem>>, %arg8: memref<1x128xf32, #tpu.memory_space<vmem>>, %arg9: memref<32x128xf32, #tpu.memory_space<vmem>>) attributes {dimension_semantics = [#tpu.dimension_semantics<arbitrary>], iteration_bounds = array<i64: 1>, scalar_prefetch = 0 : i64, scratch_operands = 0 : i64, tpu.core_type = #tpu.core_type<tc>, window_params = [{pipeline_mode = #tpu.pipeline_mode<synchronous>, transform_indices = @transform_0, window_bounds = array<i64: 32, 32>}, {pipeline_mode = #tpu.pipeline_mode<synchronous>, transform_indices = @transform_1, window_bounds = array<i64: 32, 128>}, {pipeline_mode = #tpu.pipeline_mode<synchronous>, transform_indices = @transform_2, window_bounds = array<i64: 128, 128>}, {pipeline_mode = #tpu.pipeline_mode<synchronous>, transform_indices = @transform_3, window_bounds = array<i64: 1, 128>}, {pipeline_mode = #tpu.pipeline_mode<synchronous>, transform_indices = @transform_4, window_bounds = array<i64: 128, 128>}, {pipeline_mode = #tpu.pipeline_mode<synchronous>, transform_indices = @transform_5, window_bounds = array<i64: 1, 128>}, {pipeline_mode = #tpu.pipeline_mode<synchronous>, transform_indices = @transform_6, window_bounds = array<i64: 128, 128>}, {pipeline_mode = #tpu.pipeline_mode<synchronous>, transform_indices = @transform_7, window_bounds = array<i64: 1, 128>}, {pipeline_mode = #tpu.pipeline_mode<synchronous>, transform_indices = @transform_8, window_bounds = array<i64: 32, 128>}]} {
    %c0 = arith.constant 0 : index
    %c0_0 = arith.constant 0 : index
    %0 = vector.load %arg1[%c0, %c0_0] : memref<32x32xbf16, #tpu.memory_space<vmem>>, vector<32x32xbf16>
    %c0_1 = arith.constant 0 : index
    %c0_2 = arith.constant 0 : index
    %1 = vector.load %arg2[%c0_1, %c0_2] : memref<32x128xbf16, #tpu.memory_space<vmem>>, vector<32x128xbf16>
    %c0_3 = arith.constant 0 : index
    %c0_4 = arith.constant 0 : index
    %2 = vector.load %arg3[%c0_3, %c0_4] : memref<128x128xbf16, #tpu.memory_space<vmem>>, vector<128x128xbf16>
    %c0_5 = arith.constant 0 : index
    %c0_6 = arith.constant 0 : index
    %3 = vector.load %arg4[%c0_5, %c0_6] : memref<1x128xf32, #tpu.memory_space<vmem>>, vector<1x128xf32>
    %cst = arith.constant dense<0.000000e+00> : vector<32x128xf32>
    %4 = tpu.matmul %0, %1, %cst {dimension_numbers = #tpu.dot_dimension_numbers<[1], [0], [0], [1], [0, 0, 1, 1], [], []>} : vector<32x32xbf16>, vector<32x128xbf16>, vector<32x128xf32> -> vector<32x128xf32>
    %5 = arith.truncf %4 : vector<32x128xf32> to vector<32x128xbf16>
    %cst_7 = arith.constant dense<0.000000e+00> : vector<32x128xf32>
    %6 = tpu.matmul %5, %2, %cst_7 {dimension_numbers = #tpu.dot_dimension_numbers<[1], [0], [0], [1], [0, 0, 1, 1], [], []>} : vector<32x128xbf16>, vector<128x128xbf16>, vector<32x128xf32> -> vector<32x128xf32>
    %7 = vector.broadcast %3 : vector<1x128xf32> to vector<32x128xf32>
    %8 = arith.addf %6, %7 : vector<32x128xf32>
    %cst_8 = arith.constant 0.000000e+00 : f32
    %9 = vector.broadcast %cst_8 : f32 to vector<32x128xf32>
    %10 = arith.maximumf %8, %9 : vector<32x128xf32>
    %11 = arith.truncf %10 : vector<32x128xf32> to vector<32x128xbf16>
    %c0_9 = arith.constant 0 : index
    %c0_10 = arith.constant 0 : index
    %12 = vector.load %arg5[%c0_9, %c0_10] : memref<128x128xbf16, #tpu.memory_space<vmem>>, vector<128x128xbf16>
    %c0_11 = arith.constant 0 : index
    %c0_12 = arith.constant 0 : index
    %13 = vector.load %arg6[%c0_11, %c0_12] : memref<1x128xf32, #tpu.memory_space<vmem>>, vector<1x128xf32>
    %cst_13 = arith.constant dense<0.000000e+00> : vector<32x128xf32>
    %14 = tpu.matmul %0, %11, %cst_13 {dimension_numbers = #tpu.dot_dimension_numbers<[1], [0], [0], [1], [0, 0, 1, 1], [], []>} : vector<32x32xbf16>, vector<32x128xbf16>, vector<32x128xf32> -> vector<32x128xf32>
    %15 = arith.truncf %14 : vector<32x128xf32> to vector<32x128xbf16>
    %cst_14 = arith.constant dense<0.000000e+00> : vector<32x128xf32>
    %16 = tpu.matmul %15, %12, %cst_14 {dimension_numbers = #tpu.dot_dimension_numbers<[1], [0], [0], [1], [0, 0, 1, 1], [], []>} : vector<32x128xbf16>, vector<128x128xbf16>, vector<32x128xf32> -> vector<32x128xf32>
    %17 = vector.broadcast %13 : vector<1x128xf32> to vector<32x128xf32>
    %18 = arith.addf %16, %17 : vector<32x128xf32>
    %cst_15 = arith.constant 0.000000e+00 : f32
    %19 = vector.broadcast %cst_15 : f32 to vector<32x128xf32>
    %20 = arith.maximumf %18, %19 : vector<32x128xf32>
    %21 = arith.truncf %20 : vector<32x128xf32> to vector<32x128xbf16>
    %c0_16 = arith.constant 0 : index
    %c0_17 = arith.constant 0 : index
    %22 = vector.load %arg7[%c0_16, %c0_17] : memref<128x128xbf16, #tpu.memory_space<vmem>>, vector<128x128xbf16>
    %c0_18 = arith.constant 0 : index
    %c0_19 = arith.constant 0 : index
    %23 = vector.load %arg8[%c0_18, %c0_19] : memref<1x128xf32, #tpu.memory_space<vmem>>, vector<1x128xf32>
    %cst_20 = arith.constant dense<0.000000e+00> : vector<32x128xf32>
    %24 = tpu.matmul %0, %21, %cst_20 {dimension_numbers = #tpu.dot_dimension_numbers<[1], [0], [0], [1], [0, 0, 1, 1], [], []>} : vector<32x32xbf16>, vector<32x128xbf16>, vector<32x128xf32> -> vector<32x128xf32>
    %25 = arith.truncf %24 : vector<32x128xf32> to vector<32x128xbf16>
    %cst_21 = arith.constant dense<0.000000e+00> : vector<32x128xf32>
    %26 = tpu.matmul %25, %22, %cst_21 {dimension_numbers = #tpu.dot_dimension_numbers<[1], [0], [0], [1], [0, 0, 1, 1], [], []>} : vector<32x128xbf16>, vector<128x128xbf16>, vector<32x128xf32> -> vector<32x128xf32>
    %27 = vector.broadcast %23 : vector<1x128xf32> to vector<32x128xf32>
    %28 = arith.addf %26, %27 : vector<32x128xf32>
    %c0_22 = arith.constant 0 : index
    %c0_23 = arith.constant 0 : index
    %29 = vector.load %arg9[%c0_22, %c0_23] : memref<32x128xf32, #tpu.memory_space<vmem>>, vector<32x128xf32>
    tpu.vector_store %arg9[%c0_22, %c0_23], %28 {strides = array<i32>} : memref<32x128xf32, #tpu.memory_space<vmem>>, vector<32x128xf32>,
    return
  }
  func.func @transform_0(%arg0: i32) -> (i32, i32) {
    %c0_i32 = arith.constant 0 : i32
    %c0_i32_0 = arith.constant 0 : i32
    %c0_i32_1 = arith.constant 0 : i32
    return %c0_i32, %c0_i32_0 : i32, i32
  }
  func.func @transform_1(%arg0: i32) -> (i32, i32) {
    %c0_i32 = arith.constant 0 : i32
    %c0_i32_0 = arith.constant 0 : i32
    %c0_i32_1 = arith.constant 0 : i32
    return %c0_i32, %c0_i32_0 : i32, i32
  }
  func.func @transform_2(%arg0: i32) -> (i32, i32) {
    %c0_i32 = arith.constant 0 : i32
    %c0_i32_0 = arith.constant 0 : i32
    %c0_i32_1 = arith.constant 0 : i32
    return %c0_i32, %c0_i32_0 : i32, i32
  }
  func.func @transform_3(%arg0: i32) -> (i32, i32) {
    %c0_i32 = arith.constant 0 : i32
    %c0_i32_0 = arith.constant 0 : i32
    %c0_i32_1 = arith.constant 0 : i32
    return %c0_i32, %c0_i32_0 : i32, i32
  }
  func.func @transform_4(%arg0: i32) -> (i32, i32) {
    %c0_i32 = arith.constant 0 : i32
    %c0_i32_0 = arith.constant 0 : i32
    %c0_i32_1 = arith.constant 0 : i32
    return %c0_i32, %c0_i32_0 : i32, i32
  }
  func.func @transform_5(%arg0: i32) -> (i32, i32) {
    %c0_i32 = arith.constant 0 : i32
    %c0_i32_0 = arith.constant 0 : i32
    %c0_i32_1 = arith.constant 0 : i32
    return %c0_i32, %c0_i32_0 : i32, i32
  }
  func.func @transform_6(%arg0: i32) -> (i32, i32) {
    %c0_i32 = arith.constant 0 : i32
    %c0_i32_0 = arith.constant 0 : i32
    %c0_i32_1 = arith.constant 0 : i32
    return %c0_i32, %c0_i32_0 : i32, i32
  }
  func.func @transform_7(%arg0: i32) -> (i32, i32) {
    %c0_i32 = arith.constant 0 : i32
    %c0_i32_0 = arith.constant 0 : i32
    %c0_i32_1 = arith.constant 0 : i32
    return %c0_i32, %c0_i32_0 : i32, i32
  }
  func.func @transform_8(%arg0: i32) -> (i32, i32) {
    %c0_i32 = arith.constant 0 : i32
    %c0_i32_0 = arith.constant 0 : i32
    %c0_i32_1 = arith.constant 0 : i32
    return %c0_i32, %c0_i32_0 : i32, i32
  }
}

</mosaic_0001>

<llo_original>
// kernel: tpu_custom_call.1
$region0: #{tpu_custom_call.1}
  #allocation0 [shape = 'u32[]', space=smem, size = 0x4, offset = 0x4, fixed_abs, tag = 'smem constant byte address 0x4 - core index']
  #allocation1 [shape = 'u32[144,128]{1,0:T(1,128)}', space=vmem, size = 0x12000, scoped, tag = 'internal scratch']
  %s0 = inlined_call_operand.hbm [shape: bf16[32,32], index: 0, kind: input, shape index: {}]
  %s1 = inlined_call_operand.hbm [shape: bf16[32,128], index: 1, kind: input, shape index: {}]
  %s2 = inlined_call_operand.hbm [shape: bf16[128,128], index: 2, kind: input, shape index: {}]
  %s3 = inlined_call_operand.hbm [shape: f32[1,128], index: 3, kind: input, shape index: {}]
  %s4 = inlined_call_operand.hbm [shape: bf16[128,128], index: 4, kind: input, shape index: {}]
  %s5 = inlined_call_operand.hbm [shape: f32[1,128], index: 5, kind: input, shape index: {}]
  %s6 = inlined_call_operand.hbm [shape: bf16[128,128], index: 6, kind: input, shape index: {}]
  %s7 = inlined_call_operand.hbm [shape: f32[1,128], index: 7, kind: input, shape index: {}]
  %s8 = inlined_call_operand.hbm [shape: f32[32,128], index: 8, kind: output, shape index: {}]
  %s9 = sld [smem:[#allocation0]]
  $region74: #{tpu_custom_call.1} parent=0
    _
  %s11 = ssub.s32 1, %s9
  %s12 = scalar_select 0, %s11, %s9
  $region1: #{tpu_custom_call.1} parent=0
    #allocation2 [shape = 'u8[8192]{0}', space=vmem, size = 0x2000, scoped, tag = 'input window, operand 0, single buffered']
    #allocation3 [shape = 's32[1]{0}', space=sflag, size = 0x4, scoped, tag = 'scoped memory for tpu_custom_call.1']
    #allocation4 [shape = 's32[1]{0}', space=sflag, size = 0x4, scoped, tag = 'scoped memory for tpu_custom_call.1']
    #allocation5 [shape = 'u8[8192]{0}', space=vmem, size = 0x2000, scoped, tag = 'input window, operand 1, single buffered']
    #allocation6 [shape = 's32[1]{0}', space=sflag, size = 0x4, scoped, tag = 'scoped memory for tpu_custom_call.1']
    #allocation7 [shape = 'u8[32768]{0}', space=vmem, size = 0x8000, scoped, tag = 'input window, operand 2, single buffered']
    #allocation8 [shape = 'u8[512]{0}', space=vmem, size = 0x400, scoped, tag = 'input window, operand 3, single buffered']
    #allocation9 [shape = 's32[1]{0}', space=sflag, size = 0x4, scoped, tag = 'scoped memory for tpu_custom_call.1']
    #allocation10 [shape = 'u8[32768]{0}', space=vmem, size = 0x8000, scoped, tag = 'input window, operand 4, single buffered']
    #allocation11 [shape = 'u8[512]{0}', space=vmem, size = 0x400, scoped, tag = 'input window, operand 5, single buffered']
    #allocation12 [shape = 's32[1]{0}', space=sflag, size = 0x4, scoped, tag = 'scoped memory for tpu_custom_call.1']
    #allocation13 [shape = 'u8[32768]{0}', space=vmem, size = 0x8000, scoped, tag = 'input window, operand 6, single buffered']
    #allocation14 [shape = 'u8[512]{0}', space=vmem, size = 0x400, scoped, tag = 'input window, operand 7, single buffered']
    #allocation15 [shape = 's32[1]{0}', space=sflag, size = 0x4, scoped, tag = 'scoped memory for tpu_custom_call.1']
    #allocation16 [shape = 'u8[16384]{0}', space=vmem, size = 0x4000, scoped, tag = 'output window, operand 0, single buffered']
    %13 = vsyncpa [#allocation3], 0
    %14 = vsyncpa [#allocation6], 0
    %15 = vsyncpa [#allocation9], 0
    %16 = vsyncpa [#allocation12], 0
    %17 = vsyncpa [#allocation15], 0
    %18 = vsyncpa [#allocation4], 0
    // Predicated region
    $region2: #{tpu_custom_call.1} parent=1 // pred_check
      _
    $region3: #{tpu_custom_call.1} parent=1 // pred_check_branch
      %20 = sbr.rel (0) target = $region5
    $region4: #{tpu_custom_call.1} parent=1 // pred_region
      %s22 = ssub.s32 256, 256
      %23 = vsyncadd [#allocation3], %s22
      %s24 = sshll.u32 [#allocation2], 4
      %s25 = int_to_ptr.vmem [resolvable:$true] %s24
      %30 = dma.hbm_to_vmem [thread:$0]  %s0, 256, %s25, [#allocation3], 64, 64, 4
    $region5: #{tpu_custom_call.1} parent=1 // pred_fallthru
      _
    // Predicated region
    $region6: #{tpu_custom_call.1} parent=1 // pred_check
      _
    $region7: #{tpu_custom_call.1} parent=1 // pred_check_branch
      %32 = sbr.rel (0) target = $region9
    $region8: #{tpu_custom_call.1} parent=1 // pred_region
      %s34 = ssub.s32 256, 256
      %35 = vsyncadd [#allocation6], %s34
      %s36 = sshll.u32 [#allocation5], 4
      %s37 = int_to_ptr.vmem [resolvable:$true] %s36
      %42 = dma.hbm_to_vmem [thread:$0]  %s1, 256, %s37, [#allocation6], 64, 64, 4
    $region9: #{tpu_custom_call.1} parent=1 // pred_fallthru
      _
    // Predicated region
    $region10: #{tpu_custom_call.1} parent=1 // pred_check
      _
    $region11: #{tpu_custom_call.1} parent=1 // pred_check_branch
      %44 = sbr.rel (0) target = $region13
    $region12: #{tpu_custom_call.1} parent=1 // pred_region
      %s46 = ssub.s32 1024, 1024
      %47 = vsyncadd [#allocation6], %s46
      %s48 = sshll.u32 [#allocation7], 4
      %s49 = int_to_ptr.vmem [resolvable:$true] %s48
      %54 = dma.hbm_to_vmem [thread:$0]  %s2, 1024, %s49, [#allocation6], 64, 64, 4
    $region13: #{tpu_custom_call.1} parent=1 // pred_fallthru
      _
    // Predicated region
    $region14: #{tpu_custom_call.1} parent=1 // pred_check
      _
    $region15: #{tpu_custom_call.1} parent=1 // pred_check_branch
      %56 = sbr.rel (0) target = $region17
    $region16: #{tpu_custom_call.1} parent=1 // pred_region
      %s58 = ssub.s32 16, 16
      %59 = vsyncadd [#allocation9], %s58
      %s61 = sshll.u32 [#allocation8], 4
      %s62 = int_to_ptr.vmem [resolvable:$true] %s61
      %64 = dma.hbm_to_vmem [thread:$0]  %s3, 16, %s62, [#allocation9]
    $region17: #{tpu_custom_call.1} parent=1 // pred_fallthru
      _
    // Predicated region
    $region18: #{tpu_custom_call.1} parent=1 // pred_check
      _
    $region19: #{tpu_custom_call.1} parent=1 // pred_check_branch
      %66 = sbr.rel (0) target = $region21
    $region20: #{tpu_custom_call.1} parent=1 // pred_region
      %s68 = ssub.s32 1024, 1024
      %69 = vsyncadd [#allocation9], %s68
      %s70 = sshll.u32 [#allocation10], 4
      %s71 = int_to_ptr.vmem [resolvable:$true] %s70
      %76 = dma.hbm_to_vmem [thread:$0]  %s4, 1024, %s71, [#allocation9], 64, 64, 4
    $region21: #{tpu_custom_call.1} parent=1 // pred_fallthru
      _
    // Predicated region
    $region22: #{tpu_custom_call.1} parent=1 // pred_check
      _
    $region23: #{tpu_custom_call.1} parent=1 // pred_check_branch
      %78 = sbr.rel (0) target = $region25
    $region24: #{tpu_custom_call.1} parent=1 // pred_region
      %s80 = ssub.s32 16, 16
      %81 = vsyncadd [#allocation12], %s80
      %s83 = sshll.u32 [#allocation11], 4
      %s84 = int_to_ptr.vmem [resolvable:$true] %s83
      %86 = dma.hbm_to_vmem [thread:$0]  %s5, 16, %s84, [#allocation12]
    $region25: #{tpu_custom_call.1} parent=1 // pred_fallthru
      _
    // Predicated region
    $region26: #{tpu_custom_call.1} parent=1 // pred_check
      _
    $region27: #{tpu_custom_call.1} parent=1 // pred_check_branch
      %88 = sbr.rel (0) target = $region29
    $region28: #{tpu_custom_call.1} parent=1 // pred_region
      %s90 = ssub.s32 1024, 1024
      %91 = vsyncadd [#allocation12], %s90
      %s92 = sshll.u32 [#allocation13], 4
      %s93 = int_to_ptr.vmem [resolvable:$true] %s92
      %98 = dma.hbm_to_vmem [thread:$0]  %s6, 1024, %s93, [#allocation12], 64, 64, 4
    $region29: #{tpu_custom_call.1} parent=1 // pred_fallthru
      _
    // Predicated region
    $region30: #{tpu_custom_call.1} parent=1 // pred_check
      _
    $region31: #{tpu_custom_call.1} parent=1 // pred_check_branch
      %100 = sbr.rel (0) target = $region33
    $region32: #{tpu_custom_call.1} parent=1 // pred_region
      %s102 = ssub.s32 16, 16
      %103 = vsyncadd [#allocation15], %s102
      %s105 = sshll.u32 [#allocation14], 4
      %s106 = int_to_ptr.vmem [resolvable:$true] %s105
      %108 = dma.hbm_to_vmem [thread:$0]  %s7, 16, %s106, [#allocation15]
    $region33: #{tpu_custom_call.1} parent=1 // pred_fallthru
      _
    // Predicated region
    $region34: #{tpu_custom_call.1} parent=1 // pred_check
      _
    $region35: #{tpu_custom_call.1} parent=1 // pred_check_branch
      %110 = sbr.rel (0) target = $region37
    $region36: #{tpu_custom_call.1} parent=1 // pred_region
      %111 = dma.done [#allocation3], 256
    $region37: #{tpu_custom_call.1} parent=1 // pred_fallthru
      _
    // Predicated region
    $region38: #{tpu_custom_call.1} parent=1 // pred_check
      _
    $region39: #{tpu_custom_call.1} parent=1 // pred_check_branch
      %113 = sbr.rel (0) target = $region41
    $region40: #{tpu_custom_call.1} parent=1 // pred_region
      %114 = dma.done [#allocation6], 256
    $region41: #{tpu_custom_call.1} parent=1 // pred_fallthru
      _
    // Predicated region
    $region42: #{tpu_custom_call.1} parent=1 // pred_check
      _
    $region43: #{tpu_custom_call.1} parent=1 // pred_check_branch
      %116 = sbr.rel (0) target = $region45
    $region44: #{tpu_custom_call.1} parent=1 // pred_region
      %117 = dma.done [#allocation6], 1024
    $region45: #{tpu_custom_call.1} parent=1 // pred_fallthru
      _
    // Predicated region
    $region46: #{tpu_custom_call.1} parent=1 // pred_check
      _
    $region47: #{tpu_custom_call.1} parent=1 // pred_check_branch
      %119 = sbr.rel (0) target = $region49
    $region48: #{tpu_custom_call.1} parent=1 // pred_region
      %120 = dma.done [#allocation9], 16
    $region49: #{tpu_custom_call.1} parent=1 // pred_fallthru
      _
    // Predicated region
    $region50: #{tpu_custom_call.1} parent=1 // pred_check
      _
    $region51: #{tpu_custom_call.1} parent=1 // pred_check_branch
      %122 = sbr.rel (0) target = $region53
    $region52: #{tpu_custom_call.1} parent=1 // pred_region
      %123 = dma.done [#allocation9], 1024
    $region53: #{tpu_custom_call.1} parent=1 // pred_fallthru
      _
    // Predicated region
    $region54: #{tpu_custom_call.1} parent=1 // pred_check
      _
    $region55: #{tpu_custom_call.1} parent=1 // pred_check_branch
      %125 = sbr.rel (0) target = $region57
    $region56: #{tpu_custom_call.1} parent=1 // pred_region
      %126 = dma.done [#allocation12], 16
    $region57: #{tpu_custom_call.1} parent=1 // pred_fallthru
      _
    // Predicated region
    $region58: #{tpu_custom_call.1} parent=1 // pred_check
      _
    $region59: #{tpu_custom_call.1} parent=1 // pred_check_branch
      %128 = sbr.rel (0) target = $region61
    $region60: #{tpu_custom_call.1} parent=1 // pred_region
      %129 = dma.done [#allocation12], 1024
    $region61: #{tpu_custom_call.1} parent=1 // pred_fallthru
      _
    // Predicated region
    $region62: #{tpu_custom_call.1} parent=1 // pred_check
      _
    $region63: #{tpu_custom_call.1} parent=1 // pred_check_branch
      %131 = sbr.rel (0) target = $region65
    $region64: #{tpu_custom_call.1} parent=1 // pred_region
      %132 = dma.done [#allocation15], 16
    $region65: #{tpu_custom_call.1} parent=1 // pred_fallthru
      _
    %v134 = vld [vmem:[#allocation2] sm:$0xf]
    %v135 = vld [vmem:[#allocation2 + $0x4] sm:$0xf]
    %v136 = vld [vmem:[#allocation2 + $0x8] sm:$0xf]
    %v137 = vld [vmem:[#allocation2 + $0xc] sm:$0xf]
    %v138 = vld [vmem:[#allocation5] sm:$0xf]
    %v139 = vld [vmem:[#allocation5 + $0x4] sm:$0xf]
    %v140 = vld [vmem:[#allocation5 + $0x8] sm:$0xf]
    %v141 = vld [vmem:[#allocation5 + $0xc] sm:$0xf]
    %v142 = vld [vmem:[#allocation7] sm:$0xf]
    %v143 = vld [vmem:[#allocation7 + $0x4] sm:$0xf]
    %v144 = vld [vmem:[#allocation7 + $0x8] sm:$0xf]
    %v145 = vld [vmem:[#allocation7 + $0xc] sm:$0xf]
    %v146 = vld [vmem:[#allocation7 + $0x10] sm:$0xf]
    %v147 = vld [vmem:[#allocation7 + $0x14] sm:$0xf]
    %v148 = vld [vmem:[#allocation7 + $0x18] sm:$0xf]
    %v149 = vld [vmem:[#allocation7 + $0x1c] sm:$0xf]
    %v150 = vld [vmem:[#allocation7 + $0x20] sm:$0xf]
    %v151 = vld [vmem:[#allocation7 + $0x24] sm:$0xf]
    %v152 = vld [vmem:[#allocation7 + $0x28] sm:$0xf]
    %v153 = vld [vmem:[#allocation7 + $0x2c] sm:$0xf]
    %v154 = vld [vmem:[#allocation7 + $0x30] sm:$0xf]
    %v155 = vld [vmem:[#allocation7 + $0x34] sm:$0xf]
    %v156 = vld [vmem:[#allocation7 + $0x38] sm:$0xf]
    %v157 = vld [vmem:[#allocation7 + $0x3c] sm:$0xf]
    %v158 = vld [vmem:[#allocation8] sm:$0x1]
    %v163 = vunpack.c.l.b16 %v134
    %v164 = vunpack.c.l.b16 %v135
    %v165 = vunpack.c.l.b16 %v136
    %v166 = vunpack.c.l.b16 %v137
    %v167 = vpack.c.b16 %v164, %v163
    %v168 = vpack.c.b16 %v166, %v165
    %v173 = vunpack.c.l.b16 %v138
    %v174 = vunpack.c.l.b16 %v139
    %v175 = vunpack.c.l.b16 %v140
    %v176 = vunpack.c.l.b16 %v141
    %v177 = vpack.c.b16 %v174, %v173
    %v178 = vpack.c.b16 %v176, %v175
    %vm181 = vcmask 261120
    %v183 = vsel %vm181, %v167, 0
    %v186 = vsel %vm181, %v168, 0
    %188 = vmatprep.subr.bf16.mxu0 0
    %189 = vmatpush1.bf16.msra.mxu0 %v177
    %190 = vmatprep.subr.bf16.mxu0 0
    %191 = vmatpush1.bf16.msra.mxu0 %v178
    %192 = vmatprep.subr.bf16.mxu0 0
    %193 = vmatpush1.bf16.msra.mxu0 0
    %194 = vmatprep.subr.bf16.mxu0 0
    %195 = vmatpush1.bf16.msra.mxu0 0
    %196 = vmatprep.subr.bf16.mxu0 0
    %197 = vmatpush1.bf16.msra.mxu0 0
    %198 = vmatprep.subr.bf16.mxu0 0
    %199 = vmatpush1.bf16.msra.mxu0 0
    %200 = vmatprep.subr.bf16.mxu0 0
    %201 = vmatpush1.bf16.msra.mxu0 0
    %202 = vmatprep.subr.bf16.mxu0 0
    %203 = vmatpush1.bf16.msra.mxu0 0
    %204 = vmatprep.subr.bf16.mxu0 0
    %205 = vmatpush1.bf16.msra.mxu0 0
    %206 = vmatprep.subr.bf16.mxu0 0
    %207 = vmatpush1.bf16.msra.mxu0 0
    %208 = vmatprep.subr.bf16.mxu0 0
    %209 = vmatpush1.bf16.msra.mxu0 0
    %210 = vmatprep.subr.bf16.mxu0 0
    %211 = vmatpush1.bf16.msra.mxu0 0
    %212 = vmatprep.subr.bf16.mxu0 0
    %213 = vmatpush1.bf16.msra.mxu0 0
    %214 = vmatprep.subr.bf16.mxu0 0
    %215 = vmatpush1.bf16.msra.mxu0 0
    %216 = vmatprep.subr.bf16.mxu0 0
    %217 = vmatpush1.bf16.msra.mxu0 0
    %218 = vmatprep.subr.bf16.mxu0 0
    %219 = vmatpush1.bf16.msra.mxu0 0
    %220 = vmatprep.mubr.bf16.mxu0 0
    %221 = vmatmul.mubr.bf16.gmra.mrb[0].mxu0 %v183
    %v222 = vpop.f32.mrb[0].mxu0
    %v223 = vadd.f32 0.0, %v222
    %v224 = vpop.f32.mrb[0].mxu0
    %v225 = vpop.f32.mrb[0].mxu0
    %v226 = vadd.f32 0.0, %v225
    %v227 = vpop.f32.mrb[0].mxu0
    %228 = vmatprep.mubr.bf16.mxu0 0
    %229 = vmatmul.mubr.bf16.gmra.mrb[0].mxu0 %v186
    %v230 = vpop.f32.mrb[0].mxu0
    %v231 = vadd.f32 0.0, %v230
    %v232 = vpop.f32.mrb[0].mxu0
    %v233 = vpop.f32.mrb[0].mxu0
    %v234 = vadd.f32 0.0, %v233
    %v235 = vpop.f32.mrb[0].mxu0
    %236 = vdwg.mxu0
    %v237 = vpack.c.bf16 %v226, %v223
    %v238 = vpack.c.bf16 %v234, %v231
    %v240 = vlaneseq
    %v241 = vshrl.u32 %v240, 7
    %v242 = vsub.s32 0, %v241
    %v243 = vrot.slane %v158, %v242
    %v261 = vunpack.c.l.b16 %v142
    %v262 = vunpack.c.l.b16 %v143
    %v263 = vunpack.c.l.b16 %v144
    %v264 = vunpack.c.l.b16 %v145
    %v265 = vunpack.c.l.b16 %v146
    %v266 = vunpack.c.l.b16 %v147
    %v267 = vunpack.c.l.b16 %v148
    %v268 = vunpack.c.l.b16 %v149
    %v269 = vunpack.c.l.b16 %v150
    %v270 = vunpack.c.l.b16 %v151
    %v271 = vunpack.c.l.b16 %v152
    %v272 = vunpack.c.l.b16 %v153
    %v273 = vunpack.c.l.b16 %v154
    %v274 = vunpack.c.l.b16 %v155
    %v275 = vunpack.c.l.b16 %v156
    %v276 = vunpack.c.l.b16 %v157
    %v277 = vpack.c.b16 %v262, %v261
    %v278 = vpack.c.b16 %v264, %v263
    %v279 = vpack.c.b16 %v266, %v265
    %v280 = vpack.c.b16 %v268, %v267
    %v281 = vpack.c.b16 %v270, %v269
    %v282 = vpack.c.b16 %v272, %v271
    %v283 = vpack.c.b16 %v274, %v273
    %v284 = vpack.c.b16 %v276, %v275
    %293 = vmatprep.subr.bf16.mxu0 0
    %294 = vmatpush1.bf16.msra.mxu0 %v277
    %295 = vmatprep.subr.bf16.mxu0 0
    %296 = vmatpush1.bf16.msra.mxu0 %v278
    %297 = vmatprep.subr.bf16.mxu0 0
    %298 = vmatpush1.bf16.msra.mxu0 %v279
    %299 = vmatprep.subr.bf16.mxu0 0
    %300 = vmatpush1.bf16.msra.mxu0 %v280
    %301 = vmatprep.subr.bf16.mxu0 0
    %302 = vmatpush1.bf16.msra.mxu0 %v281
    %303 = vmatprep.subr.bf16.mxu0 0
    %304 = vmatpush1.bf16.msra.mxu0 %v282
    %305 = vmatprep.subr.bf16.mxu0 0
    %306 = vmatpush1.bf16.msra.mxu0 %v283
    %307 = vmatprep.subr.bf16.mxu0 0
    %308 = vmatpush1.bf16.msra.mxu0 %v284
    %309 = vmatprep.subr.bf16.mxu0 0
    %310 = vmatpush1.bf16.msra.mxu0 0
    %311 = vmatprep.subr.bf16.mxu0 0
    %312 = vmatpush1.bf16.msra.mxu0 0
    %313 = vmatprep.subr.bf16.mxu0 0
    %314 = vmatpush1.bf16.msra.mxu0 0
    %315 = vmatprep.subr.bf16.mxu0 0
    %316 = vmatpush1.bf16.msra.mxu0 0
    %317 = vmatprep.subr.bf16.mxu0 0
    %318 = vmatpush1.bf16.msra.mxu0 0
    %319 = vmatprep.subr.bf16.mxu0 0
    %320 = vmatpush1.bf16.msra.mxu0 0
    %321 = vmatprep.subr.bf16.mxu0 0
    %322 = vmatpush1.bf16.msra.mxu0 0
    %323 = vmatprep.subr.bf16.mxu0 0
    %324 = vmatpush1.bf16.msra.mxu0 0
    %325 = vmatprep.mubr.bf16.mxu0 0
    %326 = vmatmul.mubr.bf16.gmra.mrb[0].mxu0 %v237
    %v327 = vpop.f32.mrb[0].mxu0
    %v328 = vadd.f32 %v243, %v327
    %v329 = vpop.f32.mrb[0].mxu0
    %v330 = vpop.f32.mrb[0].mxu0
    %v331 = vadd.f32 %v243, %v330
    %v332 = vpop.f32.mrb[0].mxu0
    %333 = vmatprep.mubr.bf16.mxu0 0
    %334 = vmatmul.mubr.bf16.gmra.mrb[0].mxu0 %v238
    %v335 = vpop.f32.mrb[0].mxu0
    %v336 = vadd.f32 %v243, %v335
    %v337 = vpop.f32.mrb[0].mxu0
    %v338 = vpop.f32.mrb[0].mxu0
    %v339 = vadd.f32 %v243, %v338
    %v340 = vpop.f32.mrb[0].mxu0
    %341 = vdwg.mxu0
    %v342 = vmax.f32 %v328, 0.0
    %v343 = vmax.f32 %v331, 0.0
    %v344 = vmax.f32 %v336, 0.0
    %v345 = vmax.f32 %v339, 0.0
    %v346 = vpack.c.bf16 %v343, %v342
    %v347 = vpack.c.bf16 %v345, %v344
    %v348 = vld [vmem:[#allocation10] sm:$0xf]
    %v349 = vld [vmem:[#allocation10 + $0x4] sm:$0xf]
    %v350 = vld [vmem:[#allocation10 + $0x8] sm:$0xf]
    %v351 = vld [vmem:[#allocation10 + $0xc] sm:$0xf]
    %v352 = vld [vmem:[#allocation10 + $0x10] sm:$0xf]
    %v353 = vld [vmem:[#allocation10 + $0x14] sm:$0xf]
    %v354 = vld [vmem:[#allocation10 + $0x18] sm:$0xf]
    %v355 = vld [vmem:[#allocation10 + $0x1c] sm:$0xf]
    %v356 = vld [vmem:[#allocation10 + $0x20] sm:$0xf]
    %v357 = vld [vmem:[#allocation10 + $0x24] sm:$0xf]
    %v358 = vld [vmem:[#allocation10 + $0x28] sm:$0xf]
    %v359 = vld [vmem:[#allocation10 + $0x2c] sm:$0xf]
    %v360 = vld [vmem:[#allocation10 + $0x30] sm:$0xf]
    %v361 = vld [vmem:[#allocation10 + $0x34] sm:$0xf]
    %v362 = vld [vmem:[#allocation10 + $0x38] sm:$0xf]
    %v363 = vld [vmem:[#allocation10 + $0x3c] sm:$0xf]
    %v364 = vld [vmem:[#allocation11] sm:$0x1]
    %365 = vmatprep.subr.bf16.mxu0 0
    %366 = vmatpush1.bf16.msra.mxu0 %v346
    %367 = vmatprep.subr.bf16.mxu0 0
    %368 = vmatpush1.bf16.msra.mxu0 %v347
    %369 = vmatprep.subr.bf16.mxu0 0
    %370 = vmatpush1.bf16.msra.mxu0 0
    %371 = vmatprep.subr.bf16.mxu0 0
    %372 = vmatpush1.bf16.msra.mxu0 0
    %373 = vmatprep.subr.bf16.mxu0 0
    %374 = vmatpush1.bf16.msra.mxu0 0
    %375 = vmatprep.subr.bf16.mxu0 0
    %376 = vmatpush1.bf16.msra.mxu0 0
    %377 = vmatprep.subr.bf16.mxu0 0
    %378 = vmatpush1.bf16.msra.mxu0 0
    %379 = vmatprep.subr.bf16.mxu0 0
    %380 = vmatpush1.bf16.msra.mxu0 0
    %381 = vmatprep.subr.bf16.mxu0 0
    %382 = vmatpush1.bf16.msra.mxu0 0
    %383 = vmatprep.subr.bf16.mxu0 0
    %384 = vmatpush1.bf16.msra.mxu0 0
    %385 = vmatprep.subr.bf16.mxu0 0
    %386 = vmatpush1.bf16.msra.mxu0 0
    %387 = vmatprep.subr.bf16.mxu0 0
    %388 = vmatpush1.bf16.msra.mxu0 0
    %389 = vmatprep.subr.bf16.mxu0 0
    %390 = vmatpush1.bf16.msra.mxu0 0
    %391 = vmatprep.subr.bf16.mxu0 0
    %392 = vmatpush1.bf16.msra.mxu0 0
    %393 = vmatprep.subr.bf16.mxu0 0
    %394 = vmatpush1.bf16.msra.mxu0 0
    %395 = vmatprep.subr.bf16.mxu0 0
    %396 = vmatpush1.bf16.msra.mxu0 0
    %397 = vmatprep.mubr.bf16.mxu0 0
    %398 = vmatmul.mubr.bf16.gmra.mrb[0].mxu0 %v183
    %v399 = vpop.f32.mrb[0].mxu0
    %v400 = vadd.f32 0.0, %v399
    %v401 = vpop.f32.mrb[0].mxu0
    %v402 = vpop.f32.mrb[0].mxu0
    %v403 = vadd.f32 0.0, %v402
    %v404 = vpop.f32.mrb[0].mxu0
    %405 = vmatprep.mubr.bf16.mxu0 0
    %406 = vmatmul.mubr.bf16.gmra.mrb[0].mxu0 %v186
    %v407 = vpop.f32.mrb[0].mxu0
    %v408 = vadd.f32 0.0, %v407
    %v409 = vpop.f32.mrb[0].mxu0
    %v410 = vpop.f32.mrb[0].mxu0
    %v411 = vadd.f32 0.0, %v410
    %v412 = vpop.f32.mrb[0].mxu0
    %413 = vdwg.mxu0
    %v414 = vpack.c.bf16 %v403, %v400
    %v415 = vpack.c.bf16 %v411, %v408
    %v417 = vlaneseq
    %v418 = vshrl.u32 %v417, 7
    %v419 = vsub.s32 0, %v418
    %v420 = vrot.slane %v364, %v419
    %v438 = vunpack.c.l.b16 %v348
    %v439 = vunpack.c.l.b16 %v349
    %v440 = vunpack.c.l.b16 %v350
    %v441 = vunpack.c.l.b16 %v351
    %v442 = vunpack.c.l.b16 %v352
    %v443 = vunpack.c.l.b16 %v353
    %v444 = vunpack.c.l.b16 %v354
    %v445 = vunpack.c.l.b16 %v355
    %v446 = vunpack.c.l.b16 %v356
    %v447 = vunpack.c.l.b16 %v357
    %v448 = vunpack.c.l.b16 %v358
    %v449 = vunpack.c.l.b16 %v359
    %v450 = vunpack.c.l.b16 %v360
    %v451 = vunpack.c.l.b16 %v361
    %v452 = vunpack.c.l.b16 %v362
    %v453 = vunpack.c.l.b16 %v363
    %v454 = vpack.c.b16 %v439, %v438
    %v455 = vpack.c.b16 %v441, %v440
    %v456 = vpack.c.b16 %v443, %v442
    %v457 = vpack.c.b16 %v445, %v444
    %v458 = vpack.c.b16 %v447, %v446
    %v459 = vpack.c.b16 %v449, %v448
    %v460 = vpack.c.b16 %v451, %v450
    %v461 = vpack.c.b16 %v453, %v452
    %470 = vmatprep.subr.bf16.mxu0 0
    %471 = vmatpush1.bf16.msra.mxu0 %v454
    %472 = vmatprep.subr.bf16.mxu0 0
    %473 = vmatpush1.bf16.msra.mxu0 %v455
    %474 = vmatprep.subr.bf16.mxu0 0
    %475 = vmatpush1.bf16.msra.mxu0 %v456
    %476 = vmatprep.subr.bf16.mxu0 0
    %477 = vmatpush1.bf16.msra.mxu0 %v457
    %478 = vmatprep.subr.bf16.mxu0 0
    %479 = vmatpush1.bf16.msra.mxu0 %v458
    %480 = vmatprep.subr.bf16.mxu0 0
    %481 = vmatpush1.bf16.msra.mxu0 %v459
    %482 = vmatprep.subr.bf16.mxu0 0
    %483 = vmatpush1.bf16.msra.mxu0 %v460
    %484 = vmatprep.subr.bf16.mxu0 0
    %485 = vmatpush1.bf16.msra.mxu0 %v461
    %486 = vmatprep.subr.bf16.mxu0 0
    %487 = vmatpush1.bf16.msra.mxu0 0
    %488 = vmatprep.subr.bf16.mxu0 0
    %489 = vmatpush1.bf16.msra.mxu0 0
    %490 = vmatprep.subr.bf16.mxu0 0
    %491 = vmatpush1.bf16.msra.mxu0 0
    %492 = vmatprep.subr.bf16.mxu0 0
    %493 = vmatpush1.bf16.msra.mxu0 0
    %494 = vmatprep.subr.bf16.mxu0 0
    %495 = vmatpush1.bf16.msra.mxu0 0
    %496 = vmatprep.subr.bf16.mxu0 0
    %497 = vmatpush1.bf16.msra.mxu0 0
    %498 = vmatprep.subr.bf16.mxu0 0
    %499 = vmatpush1.bf16.msra.mxu0 0
    %500 = vmatprep.subr.bf16.mxu0 0
    %501 = vmatpush1.bf16.msra.mxu0 0
    %502 = vmatprep.mubr.bf16.mxu0 0
    %503 = vmatmul.mubr.bf16.gmra.mrb[0].mxu0 %v414
    %v504 = vpop.f32.mrb[0].mxu0
    %v505 = vadd.f32 %v420, %v504
    %v506 = vpop.f32.mrb[0].mxu0
    %v507 = vpop.f32.mrb[0].mxu0
    %v508 = vadd.f32 %v420, %v507
    %v509 = vpop.f32.mrb[0].mxu0
    %510 = vmatprep.mubr.bf16.mxu0 0
    %511 = vmatmul.mubr.bf16.gmra.mrb[0].mxu0 %v415
    %v512 = vpop.f32.mrb[0].mxu0
    %v513 = vadd.f32 %v420, %v512
    %v514 = vpop.f32.mrb[0].mxu0
    %v515 = vpop.f32.mrb[0].mxu0
    %v516 = vadd.f32 %v420, %v515
    %v517 = vpop.f32.mrb[0].mxu0
    %518 = vdwg.mxu0
    %v519 = vmax.f32 %v505, 0.0
    %v520 = vmax.f32 %v508, 0.0
    %v521 = vmax.f32 %v513, 0.0
    %v522 = vmax.f32 %v516, 0.0
    %v523 = vpack.c.bf16 %v520, %v519
    %v524 = vpack.c.bf16 %v522, %v521
    %v525 = vld [vmem:[#allocation13] sm:$0xf]
    %v526 = vld [vmem:[#allocation13 + $0x4] sm:$0xf]
    %v527 = vld [vmem:[#allocation13 + $0x8] sm:$0xf]
    %v528 = vld [vmem:[#allocation13 + $0xc] sm:$0xf]
    %v529 = vld [vmem:[#allocation13 + $0x10] sm:$0xf]
    %v530 = vld [vmem:[#allocation13 + $0x14] sm:$0xf]
    %v531 = vld [vmem:[#allocation13 + $0x18] sm:$0xf]
    %v532 = vld [vmem:[#allocation13 + $0x1c] sm:$0xf]
    %v533 = vld [vmem:[#allocation13 + $0x20] sm:$0xf]
    %v534 = vld [vmem:[#allocation13 + $0x24] sm:$0xf]
    %v535 = vld [vmem:[#allocation13 + $0x28] sm:$0xf]
    %v536 = vld [vmem:[#allocation13 + $0x2c] sm:$0xf]
    %v537 = vld [vmem:[#allocation13 + $0x30] sm:$0xf]
    %v538 = vld [vmem:[#allocation13 + $0x34] sm:$0xf]
    %v539 = vld [vmem:[#allocation13 + $0x38] sm:$0xf]
    %v540 = vld [vmem:[#allocation13 + $0x3c] sm:$0xf]
    %v541 = vld [vmem:[#allocation14] sm:$0x1]
    %542 = vmatprep.subr.bf16.mxu0 0
    %543 = vmatpush1.bf16.msra.mxu0 %v523
    %544 = vmatprep.subr.bf16.mxu0 0
    %545 = vmatpush1.bf16.msra.mxu0 %v524
    %546 = vmatprep.subr.bf16.mxu0 0
    %547 = vmatpush1.bf16.msra.mxu0 0
    %548 = vmatprep.subr.bf16.mxu0 0
    %549 = vmatpush1.bf16.msra.mxu0 0
    %550 = vmatprep.subr.bf16.mxu0 0
    %551 = vmatpush1.bf16.msra.mxu0 0
    %552 = vmatprep.subr.bf16.mxu0 0
    %553 = vmatpush1.bf16.msra.mxu0 0
    %554 = vmatprep.subr.bf16.mxu0 0
    %555 = vmatpush1.bf16.msra.mxu0 0
    %556 = vmatprep.subr.bf16.mxu0 0
    %557 = vmatpush1.bf16.msra.mxu0 0
    %558 = vmatprep.subr.bf16.mxu0 0
    %559 = vmatpush1.bf16.msra.mxu0 0
    %560 = vmatprep.subr.bf16.mxu0 0
    %561 = vmatpush1.bf16.msra.mxu0 0
    %562 = vmatprep.subr.bf16.mxu0 0
    %563 = vmatpush1.bf16.msra.mxu0 0
    %564 = vmatprep.subr.bf16.mxu0 0
    %565 = vmatpush1.bf16.msra.mxu0 0
    %566 = vmatprep.subr.bf16.mxu0 0
    %567 = vmatpush1.bf16.msra.mxu0 0
    %568 = vmatprep.subr.bf16.mxu0 0
    %569 = vmatpush1.bf16.msra.mxu0 0
    %570 = vmatprep.subr.bf16.mxu0 0
    %571 = vmatpush1.bf16.msra.mxu0 0
    %572 = vmatprep.subr.bf16.mxu0 0
    %573 = vmatpush1.bf16.msra.mxu0 0
    %574 = vmatprep.mubr.bf16.mxu0 0
    %575 = vmatmul.mubr.bf16.gmra.mrb[0].mxu0 %v183
    %v576 = vpop.f32.mrb[0].mxu0
    %v577 = vadd.f32 0.0, %v576
    %v578 = vpop.f32.mrb[0].mxu0
    %v579 = vpop.f32.mrb[0].mxu0
    %v580 = vadd.f32 0.0, %v579
    %v581 = vpop.f32.mrb[0].mxu0
    %582 = vmatprep.mubr.bf16.mxu0 0
    %583 = vmatmul.mubr.bf16.gmra.mrb[0].mxu0 %v186
    %v584 = vpop.f32.mrb[0].mxu0
    %v585 = vadd.f32 0.0, %v584
    %v586 = vpop.f32.mrb[0].mxu0
    %v587 = vpop.f32.mrb[0].mxu0
    %v588 = vadd.f32 0.0, %v587
    %v589 = vpop.f32.mrb[0].mxu0
    %590 = vdwg.mxu0
    %v591 = vpack.c.bf16 %v580, %v577
    %v592 = vpack.c.bf16 %v588, %v585
    %v594 = vlaneseq
    %v595 = vshrl.u32 %v594, 7
    %v596 = vsub.s32 0, %v595
    %v597 = vrot.slane %v541, %v596
    %v615 = vunpack.c.l.b16 %v525
    %v616 = vunpack.c.l.b16 %v526
    %v617 = vunpack.c.l.b16 %v527
    %v618 = vunpack.c.l.b16 %v528
    %v619 = vunpack.c.l.b16 %v529
    %v620 = vunpack.c.l.b16 %v530
    %v621 = vunpack.c.l.b16 %v531
    %v622 = vunpack.c.l.b16 %v532
    %v623 = vunpack.c.l.b16 %v533
    %v624 = vunpack.c.l.b16 %v534
    %v625 = vunpack.c.l.b16 %v535
    %v626 = vunpack.c.l.b16 %v536
    %v627 = vunpack.c.l.b16 %v537
    %v628 = vunpack.c.l.b16 %v538
    %v629 = vunpack.c.l.b16 %v539
    %v630 = vunpack.c.l.b16 %v540
    %v631 = vpack.c.b16 %v616, %v615
    %v632 = vpack.c.b16 %v618, %v617
    %v633 = vpack.c.b16 %v620, %v619
    %v634 = vpack.c.b16 %v622, %v621
    %v635 = vpack.c.b16 %v624, %v623
    %v636 = vpack.c.b16 %v626, %v625
    %v637 = vpack.c.b16 %v628, %v627
    %v638 = vpack.c.b16 %v630, %v629
    %647 = vmatprep.subr.bf16.mxu0 0
    %648 = vmatpush1.bf16.msra.mxu0 %v631
    %649 = vmatprep.subr.bf16.mxu0 0
    %650 = vmatpush1.bf16.msra.mxu0 %v632
    %651 = vmatprep.subr.bf16.mxu0 0
    %652 = vmatpush1.bf16.msra.mxu0 %v633
    %653 = vmatprep.subr.bf16.mxu0 0
    %654 = vmatpush1.bf16.msra.mxu0 %v634
    %655 = vmatprep.subr.bf16.mxu0 0
    %656 = vmatpush1.bf16.msra.mxu0 %v635
    %657 = vmatprep.subr.bf16.mxu0 0
    %658 = vmatpush1.bf16.msra.mxu0 %v636
    %659 = vmatprep.subr.bf16.mxu0 0
    %660 = vmatpush1.bf16.msra.mxu0 %v637
    %661 = vmatprep.subr.bf16.mxu0 0
    %662 = vmatpush1.bf16.msra.mxu0 %v638
    %663 = vmatprep.subr.bf16.mxu0 0
    %664 = vmatpush1.bf16.msra.mxu0 0
    %665 = vmatprep.subr.bf16.mxu0 0
    %666 = vmatpush1.bf16.msra.mxu0 0
    %667 = vmatprep.subr.bf16.mxu0 0
    %668 = vmatpush1.bf16.msra.mxu0 0
    %669 = vmatprep.subr.bf16.mxu0 0
    %670 = vmatpush1.bf16.msra.mxu0 0
    %671 = vmatprep.subr.bf16.mxu0 0
    %672 = vmatpush1.bf16.msra.mxu0 0
    %673 = vmatprep.subr.bf16.mxu0 0
    %674 = vmatpush1.bf16.msra.mxu0 0
    %675 = vmatprep.subr.bf16.mxu0 0
    %676 = vmatpush1.bf16.msra.mxu0 0
    %677 = vmatprep.subr.bf16.mxu0 0
    %678 = vmatpush1.bf16.msra.mxu0 0
    %679 = vmatprep.mubr.bf16.mxu0 0
    %680 = vmatmul.mubr.bf16.gmra.mrb[0].mxu0 %v591
    %v681 = vpop.f32.mrb[0].mxu0
    %v682 = vadd.f32 %v597, %v681
    %v683 = vpop.f32.mrb[0].mxu0
    %v684 = vpop.f32.mrb[0].mxu0
    %v685 = vadd.f32 %v597, %v684
    %v686 = vpop.f32.mrb[0].mxu0
    %687 = vmatprep.mubr.bf16.mxu0 0
    %688 = vmatmul.mubr.bf16.gmra.mrb[0].mxu0 %v592
    %v689 = vpop.f32.mrb[0].mxu0
    %v690 = vadd.f32 %v597, %v689
    %v691 = vpop.f32.mrb[0].mxu0
    %v692 = vpop.f32.mrb[0].mxu0
    %v693 = vadd.f32 %v597, %v692
    %v694 = vpop.f32.mrb[0].mxu0
    %695 = vdwg.mxu0
    %696 = vst [vmem:[#allocation16] sm:$0xff] %v682
    %697 = vst [vmem:[#allocation16 + $0x8] sm:$0xff] %v685
    %698 = vst [vmem:[#allocation16 + $0x10] sm:$0xff] %v690
    %699 = vst [vmem:[#allocation16 + $0x18] sm:$0xff] %v693
    // Predicated region
    $region66: #{tpu_custom_call.1} parent=1 // pred_check
      _
    $region67: #{tpu_custom_call.1} parent=1 // pred_check_branch
      %701 = sbr.rel (0) target = $region69
    $region68: #{tpu_custom_call.1} parent=1 // pred_region
      %s703 = ssub.s32 512, 512
      %704 = vsyncadd [#allocation4], %s703
      %s705 = sshll.u32 [#allocation16], 4
      %s706 = int_to_ptr.vmem [resolvable:$true] %s705
      %711 = dma.vmem_to_hbm [thread:$0]  %s706, 512, %s8, [#allocation4], 128, 128, 8
    $region69: #{tpu_custom_call.1} parent=1 // pred_fallthru
      _
    // Predicated region
    $region70: #{tpu_custom_call.1} parent=1 // pred_check
      _
    $region71: #{tpu_custom_call.1} parent=1 // pred_check_branch
      %713 = sbr.rel (0) target = $region73
    $region72: #{tpu_custom_call.1} parent=1 // pred_region
      %714 = dma.done [#allocation4], 512
    $region73: #{tpu_custom_call.1} parent=1 // pred_fallthru
      _
    %715 = vsyncpa [#allocation3], 1
    %716 = vsyncpa [#allocation6], 1
    %717 = vsyncpa [#allocation9], 1
    %718 = vsyncpa [#allocation12], 1
    %719 = vsyncpa [#allocation15], 1
    %720 = vsyncpa [#allocation4], 1

</llo_original>
